<compile_context>
chip_gen: v7x
topology: tpu7x:2x2x1
jax: 0.10.0
libtpu: 0.0.40
codegen_flags: <defaults>
</compile_context>

<pallas_src>
import functools
import math

import jax
import jax.numpy as jnp
from jax import lax
from jax.experimental import pallas as pl
from jax.experimental.pallas import tpu as pltpu

M_MARGIN = 4                 # self.m
PI_APPROX = 3.14159265       # constant used by the PyTorch module
EPS = 1e-12                  # F.normalize default eps

# floor(m*acos(c)/PI) >= j  <=>  c <= cos(j*PI/m)   (acos is decreasing)
_K_THRESHOLDS = tuple(math.cos(j * PI_APPROX / M_MARGIN)
                      for j in range(1, M_MARGIN + 1))


def _round_up(x, m):
    return ((x + m - 1) // m) * m


def _normalize_rows_kernel(w_ref, out_ref):
    """out = F.normalize(w, dim=1): unit-norm rows (computed once, pass 1)."""
    w = w_ref[...]                                            # (TN, D) f32
    ssq = jnp.sum(w * w, axis=1, keepdims=True)               # (TN, 1)
    inv = jnp.minimum(lax.rsqrt(ssq), 1.0 / EPS)              # == 1/max(||w||,eps)
    out_ref[...] = (w * inv).astype(out_ref.dtype)


def _sphere_tile_kernel(x_ref, wn_ref, label_ref, out_ref, *,
                        inv_one_plus_lamb, tn):
    x = x_ref[...]                                            # (TM, D)  f32
    wn = wn_ref[...]                                          # (TN, D)  unit rows
    label = label_ref[...]                                    # (TM, 1)  int32

    # Raw inner products on the MXU; x is normalized AFTER the matmul.
    acc = lax.dot_general(
        x, wn,
        dimension_numbers=(((1,), (1,)), ((), ())),
        preferred_element_type=jnp.float32,
    )                                                         # (TM, TN)

    # Row stats of x (needed anyway for the final rescale).
    ssq_x = jnp.sum(x * x, axis=1, keepdims=True)             # (TM, 1)
    x_norm = jnp.sqrt(ssq_x)
    inv_xn = jnp.minimum(lax.rsqrt(ssq_x), 1.0 / EPS)         # == 1/max(||x||,eps)

    cos_theta = jnp.clip(acc * inv_xn, -1.0, 1.0)

    # cos(m*theta) via Chebyshev polynomial (m = 4).
    c2 = cos_theta * cos_theta
    cos_m_theta = 8.0 * c2 * c2 - 8.0 * c2 + 1.0

    # k = floor(m*acos(cos)/PI) and sign = (-1)^k via a threshold sweep
    # (no acos / floor / mod on the VPU).
    k = jnp.zeros_like(cos_theta)
    sign = jnp.ones_like(cos_theta)
    for thresh in _K_THRESHOLDS:
        le = cos_theta <= thresh
        k = k + jnp.where(le, 1.0, 0.0)
        sign = jnp.where(le, -sign, sign)
    phi_theta = sign * cos_m_theta - 2.0 * k

    # one_hot(label) under C-tiling: compare against the GLOBAL column index.
    col0 = pl.program_id(1) * tn
    col_ids = col0 + lax.broadcasted_iota(jnp.int32, cos_theta.shape, 1)
    is_target = col_ids == label                              # (TM, TN)

    out = cos_theta + jnp.where(
        is_target, (phi_theta - cos_theta) * inv_one_plus_lamb, 0.0)
    out_ref[...] = (out * x_norm).astype(out_ref.dtype)


def sphere_product(x, weight, label, *, iter_count=1):
    """Pallas implementation of SphereProduct.forward (one call, m = 4)."""
    B, D = x.shape
    C, D2 = weight.shape
    assert D == D2 and label.shape == (B,)

    base, gamma, power, lambda_min = 1000.0, 0.12, 1, 5.0
    lamb = max(lambda_min, base * (1.0 + gamma * iter_count) ** (-power))
    inv_one_plus_lamb = 1.0 / (1.0 + lamb)    # folded to a compile-time constant

    # Lane-/MXU-friendly padded shapes.
    d_pad = _round_up(D, 128)
    tm = min(256, _round_up(B, 8))
    tn = min(512, _round_up(C, 128))

    # Keep the per-step working set (double-buffered inputs + output tile)
    # comfortably inside scoped VMEM on all generations (incl. v7x's 64 MiB).
    def footprint(tm_, tn_):
        return 4 * (2 * (tm_ * d_pad + tn_ * d_pad + tm_) + 3 * tm_ * tn_)

    budget = 12 * 1024 * 1024
    while footprint(tm, tn) > budget and tn > 128:
        tn //= 2
    while footprint(tm, tn) > budget and tm > 8:
        tm //= 2

    b_pad = _round_up(B, tm)
    c_pad = _round_up(C, tn)

    xp = jnp.pad(x.astype(jnp.float32), ((0, b_pad - B), (0, d_pad - D)))
    wp = jnp.pad(weight.astype(jnp.float32), ((0, c_pad - C), (0, d_pad - D)))
    labelp = jnp.pad(label.astype(jnp.int32), (0, b_pad - B),
                     constant_values=-1).reshape(b_pad, 1)

    # ---- Pass 1: normalize weight rows once (hoisted out of the B loop) ----
    wn = pl.pallas_call(
        _normalize_rows_kernel,
        out_shape=jax.ShapeDtypeStruct((c_pad, d_pad), jnp.float32),
        grid=(c_pad // tn,),
        in_specs=[pl.BlockSpec((tn, d_pad), lambda j: (j, 0))],
        out_specs=pl.BlockSpec((tn, d_pad), lambda j: (j, 0)),
        compiler_params=pltpu.CompilerParams(
            dimension_semantics=("parallel",)),
    )(wp)

    # ---- Pass 2: tiled (B, C) grid, pipelined DMA, lane-dense tiles --------
    kernel = functools.partial(
        _sphere_tile_kernel, inv_one_plus_lamb=inv_one_plus_lamb, tn=tn)
    out = pl.pallas_call(
        kernel,
        out_shape=jax.ShapeDtypeStruct((b_pad, c_pad), jnp.float32),
        grid=(b_pad // tm, c_pad // tn),
        in_specs=[
            pl.BlockSpec((tm, d_pad), lambda i, j: (i, 0)),   # x tile
            pl.BlockSpec((tn, d_pad), lambda i, j: (j, 0)),   # unit-norm w tile
            pl.BlockSpec((tm, 1), lambda i, j: (i, 0)),       # labels for rows
        ],
        out_specs=pl.BlockSpec((tm, tn), lambda i, j: (i, j)),
        compiler_params=pltpu.CompilerParams(
            dimension_semantics=("parallel", "parallel"),
            vmem_limit_bytes=32 * 1024 * 1024,
        ),
    )(xp, wn, labelp)

    return out[:B, :C]


def sphere_product_ref(x, weight, label, *, iter_count=1):
    """Pure-JAX reference mirroring the PyTorch forward."""
    base, gamma, power, lambda_min = 1000.0, 0.12, 1, 5.0
    lamb = max(lambda_min, base * (1.0 + gamma * iter_count) ** (-power))
    xn = x / jnp.maximum(jnp.linalg.norm(x, axis=1, keepdims=True), EPS)
    wn = weight / jnp.maximum(jnp.linalg.norm(weight, axis=1, keepdims=True), EPS)
    cos_theta = jnp.clip(xn @ wn.T, -1.0, 1.0)
    cos_m_theta = 8.0 * cos_theta ** 4 - 8.0 * cos_theta ** 2 + 1.0
    theta = jnp.arccos(cos_theta)
    k = jnp.floor(M_MARGIN * theta / PI_APPROX)
    phi_theta = (-1.0) ** k * cos_m_theta - 2.0 * k
    norm_of_feature = jnp.linalg.norm(x, axis=1, keepdims=True)
    one_hot = jax.nn.one_hot(label, cos_theta.shape[1], dtype=jnp.float32)
    out = one_hot * (phi_theta - cos_theta) / (1.0 + lamb) + cos_theta
    return out * norm_of_feature


if __name__ == "__main__":
    B, in_features, out_features = 8, 64, 16

    key = jax.random.PRNGKey(0)
    kx, kw, kl = jax.random.split(key, 3)

    x = jax.random.normal(kx, (B, in_features), dtype=jnp.float32)

    # Xavier-uniform init for weight (out_features, in_features)
    bound = math.sqrt(6.0 / (in_features + out_features))
    weight = jax.random.uniform(
        kw, (out_features, in_features), minval=-bound, maxval=bound,
        dtype=jnp.float32)

    label = jax.random.randint(kl, (B,), 0, out_features, dtype=jnp.int32)

    out = sphere_product(x, weight, label)
    out = jax.block_until_ready(out)

    ref = sphere_product_ref(x, weight, label)
    assert out.shape == (B, out_features)
    assert jnp.allclose(out, ref, atol=1e-4, rtol=1e-4), "mismatch vs reference"

    print("KERNEL_OK")
</pallas_src>

<mosaic_0001>
module attributes {stable_mosaic.version = 11 : i64} {
  func.func @_normalize_rows_kernel(%arg0: i32, %arg1: memref<128x128xf32, #tpu.memory_space<vmem>>, %arg2: memref<128x128xf32, #tpu.memory_space<vmem>>) attributes {dimension_semantics = [#tpu.dimension_semantics<parallel>], iteration_bounds = array<i64: 1>, scalar_prefetch = 0 : i64, scratch_operands = 0 : i64, tpu.core_type = #tpu.core_type<tc>, window_params = [{transform_indices = @transform_0, window_bounds = array<i64: 128, 128>}, {transform_indices = @transform_1, window_bounds = array<i64: 128, 128>}]} {
    %c0 = arith.constant 0 : index
    %c0_0 = arith.constant 0 : index
    %0 = vector.load %arg1[%c0, %c0_0] : memref<128x128xf32, #tpu.memory_space<vmem>>, vector<128x128xf32>
    %1 = arith.mulf %0, %0 : vector<128x128xf32>
    %cst = arith.constant dense<0.000000e+00> : vector<128xf32>
    %2 = vector.multi_reduction <add>, %1, %cst [1] : vector<128x128xf32> to vector<128xf32>
    %3 = vector.shape_cast %2 : vector<128xf32> to vector<128x1xf32>
    %4 = math.rsqrt %3 : vector<128x1xf32>
    %cst_1 = arith.constant 9.99999995E+11 : f32
    %5 = vector.broadcast %cst_1 : f32 to vector<128x1xf32>
    %6 = arith.minimumf %4, %5 : vector<128x1xf32>
    %7 = vector.broadcast %6 : vector<128x1xf32> to vector<128x128xf32>
    %8 = arith.mulf %0, %7 : vector<128x128xf32>
    %c0_2 = arith.constant 0 : index
    %c0_3 = arith.constant 0 : index
    %9 = vector.load %arg2[%c0_2, %c0_3] : memref<128x128xf32, #tpu.memory_space<vmem>>, vector<128x128xf32>
    tpu.vector_store %arg2[%c0_2, %c0_3], %8 {strides = array<i32>} : memref<128x128xf32, #tpu.memory_space<vmem>>, vector<128x128xf32>,
    return
  }
  func.func @transform_0(%arg0: i32) -> (i32, i32) {
    %c0_i32 = arith.constant 0 : i32
    %c0_i32_0 = arith.constant 0 : i32
    return %arg0, %c0_i32 : i32, i32
  }
  func.func @transform_1(%arg0: i32) -> (i32, i32) {
    %c0_i32 = arith.constant 0 : i32
    %c0_i32_0 = arith.constant 0 : i32
    return %arg0, %c0_i32 : i32, i32
  }
}

</mosaic_0001>

<llo_original>
// kernel: tpu_custom_call.1
$region0: #{tpu_custom_call.1}
  #allocation0 [shape = 'u32[]', space=smem, size = 0x4, offset = 0x4, fixed_abs, tag = 'smem constant byte address 0x4 - core index']
  #allocation1 [shape = 'u32[144,128]{1,0:T(1,128)}', space=vmem, size = 0x12000, scoped, tag = 'internal scratch']
  %s0 = inlined_call_operand.hbm [shape: f32[128,128], index: 0, kind: input, shape index: {}]
  %s1 = inlined_call_operand.hbm [shape: f32[128,128], index: 1, kind: output, shape index: {}]
  %s2 = sld [smem:[#allocation0]]
  $region18: #{tpu_custom_call.1} parent=0
    _
  %s4 = ssub.s32 1, %s2
  %s5 = scalar_select 0, %s4, %s2
  $region1: #{tpu_custom_call.1} parent=0
    #allocation2 [shape = 'u8[65536]{0}', space=vmem, size = 0x10000, scoped, tag = 'input window, operand 0, single buffered']
    #allocation3 [shape = 's32[1]{0}', space=sflag, size = 0x4, scoped, tag = 'scoped memory for tpu_custom_call.1']
    #allocation4 [shape = 's32[1]{0}', space=sflag, size = 0x4, scoped, tag = 'scoped memory for tpu_custom_call.1']
    #allocation5 [shape = 'u8[65536]{0}', space=vmem, size = 0x10000, scoped, tag = 'output window, operand 0, single buffered']
    %6 = vsyncpa [#allocation3], 0
    %7 = vsyncpa [#allocation4], 0
    // Predicated region
    $region2: #{tpu_custom_call.1} parent=1 // pred_check
      _
    $region3: #{tpu_custom_call.1} parent=1 // pred_check_branch
      %9 = sbr.rel (0) target = $region5
    $region4: #{tpu_custom_call.1} parent=1 // pred_region
      %s11 = ssub.s32 2048, 2048
      %12 = vsyncadd [#allocation3], %s11
      %s13 = sshll.u32 [#allocation2], 4
      %s14 = int_to_ptr.vmem [resolvable:$true] %s13
      %19 = dma.hbm_to_vmem [thread:$0]  %s0, 2048, %s14, [#allocation3], 128, 128, 8
    $region5: #{tpu_custom_call.1} parent=1 // pred_fallthru
      _
    // Predicated region
    $region6: #{tpu_custom_call.1} parent=1 // pred_check
      _
    $region7: #{tpu_custom_call.1} parent=1 // pred_check_branch
      %21 = sbr.rel (0) target = $region9
    $region8: #{tpu_custom_call.1} parent=1 // pred_region
      %22 = dma.done [#allocation3], 2048
    $region9: #{tpu_custom_call.1} parent=1 // pred_fallthru
      _
    %v23 = vld [vmem:[#allocation2] sm:$0xff]
    %v24 = vld [vmem:[#allocation2 + $0x8] sm:$0xff]
    %v25 = vld [vmem:[#allocation2 + $0x10] sm:$0xff]
    %v26 = vld [vmem:[#allocation2 + $0x18] sm:$0xff]
    %v27 = vld [vmem:[#allocation2 + $0x20] sm:$0xff]
    %v28 = vld [vmem:[#allocation2 + $0x28] sm:$0xff]
    %v29 = vld [vmem:[#allocation2 + $0x30] sm:$0xff]
    %v30 = vld [vmem:[#allocation2 + $0x38] sm:$0xff]
    %v31 = vld [vmem:[#allocation2 + $0x40] sm:$0xff]
    %v32 = vld [vmem:[#allocation2 + $0x48] sm:$0xff]
    %v33 = vld [vmem:[#allocation2 + $0x50] sm:$0xff]
    %v34 = vld [vmem:[#allocation2 + $0x58] sm:$0xff]
    %v35 = vld [vmem:[#allocation2 + $0x60] sm:$0xff]
    %v36 = vld [vmem:[#allocation2 + $0x68] sm:$0xff]
    %v37 = vld [vmem:[#allocation2 + $0x70] sm:$0xff]
    %v38 = vld [vmem:[#allocation2 + $0x78] sm:$0xff]
    %v39 = vmul.f32 %v23, %v23
    %v40 = vmul.f32 %v24, %v24
    %v41 = vmul.f32 %v25, %v25
    %v42 = vmul.f32 %v26, %v26
    %v43 = vmul.f32 %v27, %v27
    %v44 = vmul.f32 %v28, %v28
    %v45 = vmul.f32 %v29, %v29
    %v46 = vmul.f32 %v30, %v30
    %v47 = vmul.f32 %v31, %v31
    %v48 = vmul.f32 %v32, %v32
    %v49 = vmul.f32 %v33, %v33
    %v50 = vmul.f32 %v34, %v34
    %v51 = vmul.f32 %v35, %v35
    %v52 = vmul.f32 %v36, %v36
    %v53 = vmul.f32 %v37, %v37
    %v54 = vmul.f32 %v38, %v38
    %55 = vadd.xlane.f32.xlu0 %v39
    %v56 = vpop.xlane.xlu0 %55
    %57 = vadd.xlane.f32.xlu0 %v40
    %v58 = vpop.xlane.xlu0 %57
    %59 = vadd.xlane.f32.xlu0 %v41
    %v60 = vpop.xlane.xlu0 %59
    %61 = vadd.xlane.f32.xlu0 %v42
    %v62 = vpop.xlane.xlu0 %61
    %63 = vadd.xlane.f32.xlu0 %v43
    %v64 = vpop.xlane.xlu0 %63
    %65 = vadd.xlane.f32.xlu0 %v44
    %v66 = vpop.xlane.xlu0 %65
    %67 = vadd.xlane.f32.xlu0 %v45
    %v68 = vpop.xlane.xlu0 %67
    %69 = vadd.xlane.f32.xlu0 %v46
    %v70 = vpop.xlane.xlu0 %69
    %71 = vadd.xlane.f32.xlu0 %v47
    %v72 = vpop.xlane.xlu0 %71
    %73 = vadd.xlane.f32.xlu0 %v48
    %v74 = vpop.xlane.xlu0 %73
    %75 = vadd.xlane.f32.xlu0 %v49
    %v76 = vpop.xlane.xlu0 %75
    %77 = vadd.xlane.f32.xlu0 %v50
    %v78 = vpop.xlane.xlu0 %77
    %79 = vadd.xlane.f32.xlu0 %v51
    %v80 = vpop.xlane.xlu0 %79
    %81 = vadd.xlane.f32.xlu0 %v52
    %v82 = vpop.xlane.xlu0 %81
    %83 = vadd.xlane.f32.xlu0 %v53
    %v84 = vpop.xlane.xlu0 %83
    %85 = vadd.xlane.f32.xlu0 %v54
    %v86 = vpop.xlane.xlu0 %85
    %v87 = vrsqrt.pop %v56
    %v88 = vrsqrt.pop %v58
    %v89 = vrsqrt.pop %v60
    %v90 = vrsqrt.pop %v62
    %v91 = vrsqrt.pop %v64
    %v92 = vrsqrt.pop %v66
    %v93 = vrsqrt.pop %v68
    %v94 = vrsqrt.pop %v70
    %v95 = vrsqrt.pop %v72
    %v96 = vrsqrt.pop %v74
    %v97 = vrsqrt.pop %v76
    %v98 = vrsqrt.pop %v78
    %v99 = vrsqrt.pop %v80
    %v100 = vrsqrt.pop %v82
    %v101 = vrsqrt.pop %v84
    %v102 = vrsqrt.pop %v86
    %v103 = vmin.f32 %v87, 1e+12
    %v104 = vmin.f32 %v88, 1e+12
    %v105 = vmin.f32 %v89, 1e+12
    %v106 = vmin.f32 %v90, 1e+12
    %v107 = vmin.f32 %v91, 1e+12
    %v108 = vmin.f32 %v92, 1e+12
    %v109 = vmin.f32 %v93, 1e+12
    %v110 = vmin.f32 %v94, 1e+12
    %v111 = vmin.f32 %v95, 1e+12
    %v112 = vmin.f32 %v96, 1e+12
    %v113 = vmin.f32 %v97, 1e+12
    %v114 = vmin.f32 %v98, 1e+12
    %v115 = vmin.f32 %v99, 1e+12
    %v116 = vmin.f32 %v100, 1e+12
    %v117 = vmin.f32 %v101, 1e+12
    %v118 = vmin.f32 %v102, 1e+12
    %v119 = vmul.f32 %v23, %v103
    %v120 = vmul.f32 %v24, %v104
    %v121 = vmul.f32 %v25, %v105
    %v122 = vmul.f32 %v26, %v106
    %v123 = vmul.f32 %v27, %v107
    %v124 = vmul.f32 %v28, %v108
    %v125 = vmul.f32 %v29, %v109
    %v126 = vmul.f32 %v30, %v110
    %v127 = vmul.f32 %v31, %v111
    %v128 = vmul.f32 %v32, %v112
    %v129 = vmul.f32 %v33, %v113
    %v130 = vmul.f32 %v34, %v114
    %v131 = vmul.f32 %v35, %v115
    %v132 = vmul.f32 %v36, %v116
    %v133 = vmul.f32 %v37, %v117
    %v134 = vmul.f32 %v38, %v118
    %135 = vst [vmem:[#allocation5] sm:$0xff] %v119
    %136 = vst [vmem:[#allocation5 + $0x8] sm:$0xff] %v120
    %137 = vst [vmem:[#allocation5 + $0x10] sm:$0xff] %v121
    %138 = vst [vmem:[#allocation5 + $0x18] sm:$0xff] %v122
    %139 = vst [vmem:[#allocation5 + $0x20] sm:$0xff] %v123
    %140 = vst [vmem:[#allocation5 + $0x28] sm:$0xff] %v124
    %141 = vst [vmem:[#allocation5 + $0x30] sm:$0xff] %v125
    %142 = vst [vmem:[#allocation5 + $0x38] sm:$0xff] %v126
    %143 = vst [vmem:[#allocation5 + $0x40] sm:$0xff] %v127
    %144 = vst [vmem:[#allocation5 + $0x48] sm:$0xff] %v128
    %145 = vst [vmem:[#allocation5 + $0x50] sm:$0xff] %v129
    %146 = vst [vmem:[#allocation5 + $0x58] sm:$0xff] %v130
    %147 = vst [vmem:[#allocation5 + $0x60] sm:$0xff] %v131
    %148 = vst [vmem:[#allocation5 + $0x68] sm:$0xff] %v132
    %149 = vst [vmem:[#allocation5 + $0x70] sm:$0xff] %v133
    %150 = vst [vmem:[#allocation5 + $0x78] sm:$0xff] %v134
    // Predicated region
    $region10: #{tpu_custom_call.1} parent=1 // pred_check
      _
    $region11: #{tpu_custom_call.1} parent=1 // pred_check_branch
      %152 = sbr.rel (0) target = $region13
    $region12: #{tpu_custom_call.1} parent=1 // pred_region
      %s154 = ssub.s32 2048, 2048
      %155 = vsyncadd [#allocation4], %s154
      %s156 = sshll.u32 [#allocation5], 4
      %s157 = int_to_ptr.vmem [resolvable:$true] %s156
      %162 = dma.vmem_to_hbm [thread:$0]  %s157, 2048, %s1, [#allocation4], 128, 128, 8
    $region13: #{tpu_custom_call.1} parent=1 // pred_fallthru
      _
    // Predicated region
    $region14: #{tpu_custom_call.1} parent=1 // pred_check
      _
    $region15: #{tpu_custom_call.1} parent=1 // pred_check_branch
      %164 = sbr.rel (0) target = $region17
    $region16: #{tpu_custom_call.1} parent=1 // pred_region
      %165 = dma.done [#allocation4], 2048
    $region17: #{tpu_custom_call.1} parent=1 // pred_fallthru
      _
    %166 = vsyncpa [#allocation3], 1
    %167 = vsyncpa [#allocation4], 1

</llo_original>
